<compile_context>
chip_gen: v6e
topology: v6e:2x2x1
jax: 0.10.0
libtpu: 0.0.40
codegen_flags: <defaults>
</compile_context>

<pallas_src>
import jax
import jax.numpy as jnp
from jax.experimental import pallas as pl
from jax.experimental.pallas import tpu as pltpu

_BIAS_ROWS = 8  # sublane-aligned block of ones rows; column 0 carries the bias


def _round_up(a, m):
    return (a + m - 1) // m * m


def _make_kernel(K, bias_rows):
    def kernel(xm_ref, xh_ref, w_ref, o_ref):
        # xm_ref: (NB, C_in_p, L_TILE)              main input tile
        # xh_ref: (NB, C_in_p, 128)                 halo = next 128 input cols
        # w_ref : (C_out_p, K*C_in_p + bias_rows)   flattened taps + bias col
        # o_ref : (NB, C_out_p, L_TILE)
        nb, _, l_tile = xm_ref.shape
        w2 = w_ref[...]                                   # (C_out_p, F)
        ones = jnp.ones((bias_rows, l_tile), dtype=w2.dtype)

        for bi in range(nb):                              # nb is a static int
            # Windowed input covering L_TILE + 128 cols (halo for taps 1..K-1)
            x_win = jnp.concatenate([xm_ref[bi], xh_ref[bi]], axis=-1)
            # In-kernel im2col: K lane-shifted copies stacked on the channel
            # axis, plus a ones-row block so the bias rides the contraction.
            taps = [x_win[:, k:k + l_tile] for k in range(K)]
            x2 = jnp.concatenate(taps + [ones], axis=0)   # (F, L_TILE)

            acc = jnp.dot(w2, x2, preferred_element_type=jnp.float32)
            o_ref[bi, :, :] = jnp.maximum(acc, 0.0).astype(o_ref.dtype)

    return kernel


def conv_block(x, w, b, *, padding=0, l_tile=1024, nb=1, compute_dtype=None):
    """ReLU(Conv1d(x)) with PyTorch semantics (stride=1, dilation=1, groups=1).

    x: (N, C_in, L), w: (C_out, C_in, K), b: (C_out,)
    returns (N, C_out, L_out) with L_out = L + 2*padding - K + 1
    """
    N, C_in, L = x.shape
    C_out, C_in_w, K = w.shape
    assert C_in_w == C_in, "groups != 1 is not supported"
    assert padding >= 0
    L_out = L + 2 * padding - K + 1
    assert L_out >= 1, "input (plus padding) shorter than the kernel"
    assert K - 1 <= 128, "kernel taps wider than one 128-lane halo chunk"

    # TPU-friendly padded sizes.
    C_in_p = _round_up(C_in, 8)
    C_out_p = _round_up(C_out, 8)
    F = K * C_in_p + _BIAS_ROWS

    L_TILE = _round_up(min(max(l_tile, 128), _round_up(L_out, 128)), 128)
    num_lt = pl.cdiv(L_out, L_TILE)
    N_pad = _round_up(N, nb)
    num_nb = N_pad // nb
    Lx_pad = num_lt * L_TILE + 128            # +128 halo chunk for last tile

    in_dtype = x.dtype if compute_dtype is None else compute_dtype

    # Zero-pad batch, channels, and length (conv padding + tile/halo padding).
    x_pad = jnp.pad(
        x, ((0, N_pad - N), (0, C_in_p - C_in), (padding, Lx_pad - L - padding))
    ).astype(in_dtype)

    # Reorder/flatten weights to (C_out_p, K*C_in_p); bias goes into column
    # K*C_in_p, multiplying the ones rows added in-kernel.
    w_t = jnp.transpose(w, (0, 2, 1))                                # (C_out, K, C_in)
    w_t = jnp.pad(w_t, ((0, C_out_p - C_out), (0, 0), (0, C_in_p - C_in)))
    w2 = jnp.zeros((C_out_p, F), dtype=jnp.float32)
    w2 = w2.at[:, :K * C_in_p].set(w_t.reshape(C_out_p, K * C_in_p))
    w2 = w2.at[:, K * C_in_p].set(jnp.pad(b, (0, C_out_p - C_out)))
    w2 = w2.astype(in_dtype)

    halo_blocks = L_TILE // 128
    kernel = _make_kernel(K, _BIAS_ROWS)

    out = pl.pallas_call(
        kernel,
        out_shape=jax.ShapeDtypeStruct((N_pad, C_out_p, num_lt * L_TILE), x.dtype),
        grid=(num_nb, num_lt),
        in_specs=[
            # main tile: lane-aligned window of L_TILE columns
            pl.BlockSpec((nb, C_in_p, L_TILE), lambda n, l: (n, 0, l)),
            # halo: the next 128 columns (same array, different index map)
            pl.BlockSpec((nb, C_in_p, 128),
                         lambda n, l: (n, 0, (l + 1) * halo_blocks)),
            # weights (+ folded bias): constant index map -> loaded once
            pl.BlockSpec((C_out_p, F), lambda n, l: (0, 0)),
        ],
        out_specs=pl.BlockSpec((nb, C_out_p, L_TILE), lambda n, l: (n, 0, l)),
        compiler_params=pltpu.CompilerParams(
            dimension_semantics=("parallel", "parallel")),
    )(x_pad, x_pad, w2)

    return out[:N, :C_out, :L_out]


def conv_block_ref(x, w, b, *, padding=0):
    """Pure-JAX reference (lax.conv) for correctness checking."""
    out = jax.lax.conv_general_dilated(
        x, w, window_strides=(1,), padding=[(padding, padding)],
        dimension_numbers=("NCH", "OIH", "NCH"))
    return jnp.maximum(out + b[None, :, None], 0.0)


if __name__ == "__main__":
    key = jax.random.PRNGKey(0)

    # --- Test 1: shapes consistent with the module: Conv1d(4, 8, k=3, pad=1) ---
    N, C_in, C_out, K, L, PAD = 2, 4, 8, 3, 16, 1
    kx, kw, kb, key = jax.random.split(key, 4)
    x = jax.random.normal(kx, (N, C_in, L), dtype=jnp.float32)
    bound = 1.0 / jnp.sqrt(C_in * K)
    w = jax.random.uniform(kw, (C_out, C_in, K), minval=-bound, maxval=bound,
                           dtype=jnp.float32)
    b = jax.random.uniform(kb, (C_out,), minval=-bound, maxval=bound,
                           dtype=jnp.float32)

    out = jax.block_until_ready(conv_block(x, w, b, padding=PAD))
    ref = conv_block_ref(x, w, b, padding=PAD)
    assert out.shape == (N, C_out, L + 2 * PAD - K + 1)
    assert jnp.allclose(out, ref, atol=1e-5, rtol=1e-5)

    # --- Test 2: multi-L-tile + batch-blocked path (nb=2, two 128-lane tiles) ---
    N2, C_in2, C_out2, K2, L2, PAD2 = 3, 3, 10, 5, 200, 2
    kx2, kw2, kb2 = jax.random.split(key, 3)
    x2 = jax.random.normal(kx2, (N2, C_in2, L2), dtype=jnp.float32)
    bound2 = 1.0 / jnp.sqrt(C_in2 * K2)
    w2 = jax.random.uniform(kw2, (C_out2, C_in2, K2), minval=-bound2,
                            maxval=bound2, dtype=jnp.float32)
    b2 = jax.random.uniform(kb2, (C_out2,), minval=-bound2, maxval=bound2,
                            dtype=jnp.float32)

    out2 = jax.block_until_ready(
        conv_block(x2, w2, b2, padding=PAD2, l_tile=128, nb=2))
    ref2 = conv_block_ref(x2, w2, b2, padding=PAD2)
    assert out2.shape == (N2, C_out2, L2 + 2 * PAD2 - K2 + 1)
    assert jnp.allclose(out2, ref2, atol=1e-5, rtol=1e-5)

    print("KERNEL_OK")
</pallas_src>

<mosaic_0001>
module attributes {stable_mosaic.version = 11 : i64} {
  func.func @kernel(%arg0: i32, %arg1: i32, %arg2: memref<1x8x128xf32, #tpu.memory_space<vmem>>, %arg3: memref<1x8x128xf32, #tpu.memory_space<vmem>>, %arg4: memref<8x32xf32, #tpu.memory_space<vmem>>, %arg5: memref<1x8x128xf32, #tpu.memory_space<vmem>>) attributes {dimension_semantics = [#tpu.dimension_semantics<parallel>, #tpu.dimension_semantics<parallel>], iteration_bounds = array<i64: 2, 1>, scalar_prefetch = 0 : i64, scratch_operands = 0 : i64, tpu.core_type = #tpu.core_type<tc>, window_params = [{transform_indices = @transform_0, window_bounds = array<i64: 1, 8, 128>}, {transform_indices = @transform_1, window_bounds = array<i64: 1, 8, 128>}, {pipeline_mode = #tpu.pipeline_mode<synchronous>, transform_indices = @transform_2, window_bounds = array<i64: 8, 32>}, {transform_indices = @transform_3, window_bounds = array<i64: 1, 8, 128>}]} {
    %c0 = arith.constant 0 : index
    %c0_0 = arith.constant 0 : index
    %0 = vector.load %arg4[%c0, %c0_0] : memref<8x32xf32, #tpu.memory_space<vmem>>, vector<8x32xf32>
    %cst = arith.constant 1.000000e+00 : f32
    %1 = vector.broadcast %cst : f32 to vector<8x128xf32>
    %c0_1 = arith.constant 0 : index
    %c0_2 = arith.constant 0 : index
    %c0_3 = arith.constant 0 : index
    %2 = vector.load %arg2[%c0_1, %c0_2, %c0_3] : memref<1x8x128xf32, #tpu.memory_space<vmem>>, vector<1x8x128xf32>
    %3 = vector.shape_cast %2 : vector<1x8x128xf32> to vector<8x128xf32>
    %c0_4 = arith.constant 0 : index
    %c0_5 = arith.constant 0 : index
    %c0_6 = arith.constant 0 : index
    %4 = vector.load %arg3[%c0_4, %c0_5, %c0_6] : memref<1x8x128xf32, #tpu.memory_space<vmem>>, vector<1x8x128xf32>
    %5 = vector.shape_cast %4 : vector<1x8x128xf32> to vector<8x128xf32>
    %6 = tpu.concatenate %3, %5 in 1 : vector<8x128xf32>, vector<8x128xf32> -> vector<8x256xf32>
    %7 = vector.extract_strided_slice %6 {offsets = [0, 0], sizes = [8, 128], strides = [1, 1]} : vector<8x256xf32> to vector<8x128xf32>
    %8 = vector.extract_strided_slice %6 {offsets = [0, 1], sizes = [8, 128], strides = [1, 1]} : vector<8x256xf32> to vector<8x128xf32>
    %9 = vector.extract_strided_slice %6 {offsets = [0, 2], sizes = [8, 128], strides = [1, 1]} : vector<8x256xf32> to vector<8x128xf32>
    %10 = tpu.concatenate %7, %8, %9, %1 in 0 : vector<8x128xf32>, vector<8x128xf32>, vector<8x128xf32>, vector<8x128xf32> -> vector<32x128xf32>
    %cst_7 = arith.constant dense<0.000000e+00> : vector<8x128xf32>
    %11 = tpu.matmul %0, %10, %cst_7 {dimension_numbers = #tpu.dot_dimension_numbers<[1], [0], [0], [1], [0, 0, 1, 1], [], []>} : vector<8x32xf32>, vector<32x128xf32>, vector<8x128xf32> -> vector<8x128xf32>
    %cst_8 = arith.constant 0.000000e+00 : f32
    %12 = vector.broadcast %cst_8 : f32 to vector<8x128xf32>
    %13 = arith.maximumf %11, %12 : vector<8x128xf32>
    %c0_9 = arith.constant 0 : index
    %c0_10 = arith.constant 0 : index
    %c0_11 = arith.constant 0 : index
    %14 = vector.load %arg5[%c0_9, %c0_10, %c0_11] : memref<1x8x128xf32, #tpu.memory_space<vmem>>, vector<1x8x128xf32>
    %15 = vector.shape_cast %14 : vector<1x8x128xf32> to vector<8x128xf32>
    %16 = vector.shape_cast %13 : vector<8x128xf32> to vector<1x8x128xf32>
    tpu.vector_store %arg5[%c0_9, %c0_10, %c0_11], %16 {strides = array<i32>} : memref<1x8x128xf32, #tpu.memory_space<vmem>>, vector<1x8x128xf32>,
    return
  }
  func.func @transform_0(%arg0: i32, %arg1: i32) -> (i32, i32, i32) {
    %c0_i32 = arith.constant 0 : i32
    %c0_i32_0 = arith.constant 0 : i32
    return %arg0, %c0_i32, %arg1 : i32, i32, i32
  }
  func.func @transform_1(%arg0: i32, %arg1: i32) -> (i32, i32, i32) {
    %c1_i32 = arith.constant 1 : i32
    %0 = arith.addi %arg1, %c1_i32 : i32
    %c1_i32_0 = arith.constant 1 : i32
    %1 = arith.muli %0, %c1_i32_0 : i32
    %c0_i32 = arith.constant 0 : i32
    %c0_i32_1 = arith.constant 0 : i32
    return %arg0, %c0_i32, %1 : i32, i32, i32
  }
  func.func @transform_2(%arg0: i32, %arg1: i32) -> (i32, i32) {
    %c0_i32 = arith.constant 0 : i32
    %c0_i32_0 = arith.constant 0 : i32
    %c0_i32_1 = arith.constant 0 : i32
    return %c0_i32, %c0_i32_0 : i32, i32
  }
  func.func @transform_3(%arg0: i32, %arg1: i32) -> (i32, i32, i32) {
    %c0_i32 = arith.constant 0 : i32
    %c0_i32_0 = arith.constant 0 : i32
    return %arg0, %c0_i32, %arg1 : i32, i32, i32
  }
}

</mosaic_0001>

<llo_original>
// kernel: tpu_custom_call.1
$region0: #{tpu_custom_call.1}
  #allocation0 [shape = 'u32[]', space=smem, size = 0x4, offset = 0x4, fixed_abs, tag = 'smem constant byte address 0x4 - core index']
  #allocation1 [shape = 'u32[144,128]{1,0:T(1,128)}', space=vmem, size = 0x12000, scoped, tag = 'internal scratch']
  %s0 = inlined_call_operand.hbm [shape: f32[2,8,256], index: 0, kind: input, shape index: {}]
  %s1 = inlined_call_operand.hbm [shape: f32[2,8,256], index: 1, kind: input, shape index: {}]
  %s2 = inlined_call_operand.hbm [shape: f32[8,32], index: 2, kind: input, shape index: {}]
  %s3 = inlined_call_operand.hbm [shape: f32[2,8,128], index: 3, kind: output, shape index: {}]
  %s4 = sld [smem:[#allocation0]]
  $region57: #{tpu_custom_call.1} parent=0
    _
  %s6 = ssub.s32 1, %s4
  %s7 = scalar_select 0, %s6, %s4
  $region1: #{tpu_custom_call.1} parent=0
    #allocation2 [shape = 'u8[8192]{0}', space=vmem, size = 0x2000, scoped, tag = 'input window, operand 0']
    #allocation3 [shape = 's32[2]{0}', space=sflag, size = 0x8, scoped, tag = 'scoped memory for tpu_custom_call.1']
    #allocation4 [shape = 's32[2]{0}', space=sflag, size = 0x8, scoped, tag = 'scoped memory for tpu_custom_call.1']
    #allocation5 [shape = 'u8[8192]{0}', space=vmem, size = 0x2000, scoped, tag = 'input window, operand 1']
    #allocation6 [shape = 's32[2]{0}', space=sflag, size = 0x8, scoped, tag = 'scoped memory for tpu_custom_call.1']
    #allocation7 [shape = 'u8[4096]{0}', space=vmem, size = 0x1000, scoped, tag = 'input window, operand 2, single buffered']
    #allocation8 [shape = 'u8[8192]{0}', space=vmem, size = 0x2000, scoped, tag = 'output window, operand 0']
    %8 = vsyncpa [#allocation3], 0
    %s9 = scalar_lea.sflag [#allocation3], 1
    %10 = vsyncpa %s9, 0
    %11 = vsyncpa [#allocation6], 0
    %s12 = scalar_lea.sflag [#allocation6], 1
    %13 = vsyncpa %s12, 0
    %14 = vsyncpa [#allocation4], 0
    %s15 = scalar_lea.sflag [#allocation4], 1
    %16 = vsyncpa %s15, 0
    loop: start=0, step=1, limit=4
    $region2: #{tpu_custom_call.1} parent=1 // loop_pre_header
      _
    $region3: #{tpu_custom_call.1} parent=1 // loop_header
      %s18 = sphi 0, %s22
      %p19 = scmp.ge.s32.totalorder %s18, 4
      %s25 = sphi 0, %s37
      %s26 = sphi 0, %s33
      %s27 = sphi 0, %s25
      %s28 = sphi 0, %s26
      %s29 = sphi 0, %s27
      %s30 = sphi 0, %s28
      %s42 = sphi 0, %s44
      %s45 = sphi 0, %s42
      %s46 = sphi 0, %s45
      %s62 = sphi 0, %s46
      %s72 = sphi 0, %s74
      %s75 = sphi 0, %s72
      %s76 = sphi 0, %s75
      %s92 = sphi 0, %s76
      %s96 = sphi 0, %s96
      %s98 = sphi 0, %s96
      %s99 = sphi 0, %s98
      %s113 = sphi 0, %s99
      %s121 = sphi 0, %s123
      %s124 = sphi 0, %s121
      %s125 = sphi 0, %s124
      %s141 = sphi 0, %s125
    $region4: #{tpu_custom_call.1} parent=1 // loop_header_branch
      %21 = sbr.rel (%p19) target = $region8
    $region5: #{tpu_custom_call.1} parent=1 // loop_body
      %s23 = ssub.s32 %s18, 1
      %s24 = ssub.s32 %s18, 2
      %s31 = sadd.s32 1, %s26
      %p32 = scmp.ge.s32.totalorder %s31, 1
      %s33 = scalar_select %p32, 0, %s31
      %s34 = sadd.s32 1, %s25
      %s35 = scalar_select %p32, %s34, %s25
      %p36 = scmp.ge.s32.totalorder %s35, 2
      %s37 = scalar_select %p36, 0, %s35
      %s38 = ssub.s32 %s25, %s37
      %s39 = ssub.s32 %s26, %s33
      %s40 = sor.u32 %s38, %s39
      %p41 = scmp.eq.s32.totalorder %s40, 0
      %s43 = sadd.s32 %s42, 1
      %s44 = scalar_select %p41, %s42, %s43
      %p47 = pneg %p41
      %p48 = scmp.eq.s32.totalorder %s18, 1
      %p49 = por %p47, %p48
      %p50 = scmp.ne.s32.totalorder %s42, %s45
      %p51 = scmp.eq.s32.totalorder %s18, 0
      %p52 = por %p50, %p51
      %p53 = scmp.ne.s32.totalorder %s42, %s45
      %p54 = scmp.eq.s32.totalorder %s23, 1
      %p55 = por %p53, %p54
      %p56 = scmp.ne.s32.totalorder %s45, %s46
      %p57 = scmp.eq.s32.totalorder %s23, 0
      %p58 = por %p56, %p57
      %p59 = scmp.ne.s32.totalorder %s45, %s46
      %p60 = scmp.eq.s32.totalorder %s24, 1
      %p61 = por %p59, %p60
      %p63 = scmp.ne.s32.totalorder %s46, %s62
      %p64 = scmp.eq.s32.totalorder %s24, 0
      %p65 = por %p63, %p64
      %s66 = sadd.s32 %s26, 1
      %s67 = sadd.s32 %s33, 1
      %s68 = ssub.s32 %s25, %s37
      %s69 = ssub.s32 %s66, %s67
      %s70 = sor.u32 %s68, %s69
      %p71 = scmp.eq.s32.totalorder %s70, 0
      %s73 = sadd.s32 %s72, 1
      %s74 = scalar_select %p71, %s72, %s73
      %p77 = pneg %p71
      %p78 = scmp.eq.s32.totalorder %s18, 1
      %p79 = por %p77, %p78
      %p80 = scmp.ne.s32.totalorder %s72, %s75
      %p81 = scmp.eq.s32.totalorder %s18, 0
      %p82 = por %p80, %p81
      %p83 = scmp.ne.s32.totalorder %s72, %s75
      %p84 = scmp.eq.s32.totalorder %s23, 1
      %p85 = por %p83, %p84
      %p86 = scmp.ne.s32.totalorder %s75, %s76
      %p87 = scmp.eq.s32.totalorder %s23, 0
      %p88 = por %p86, %p87
      %p89 = scmp.ne.s32.totalorder %s75, %s76
      %p90 = scmp.eq.s32.totalorder %s24, 1
      %p91 = por %p89, %p90
      %p93 = scmp.ne.s32.totalorder %s76, %s92
      %p94 = scmp.eq.s32.totalorder %s24, 0
      %p95 = por %p93, %p94
      %s97 = sadd.s32 %s96, 1
      %p100 = scmp.eq.s32.totalorder %s18, 1
      %p101 = scmp.ne.s32.totalorder %s96, %s98
      %p102 = scmp.eq.s32.totalorder %s18, 0
      %p103 = por %p101, %p102
      %p104 = scmp.ne.s32.totalorder %s96, %s98
      %p105 = scmp.eq.s32.totalorder %s23, 1
      %p106 = por %p104, %p105
      %p107 = scmp.ne.s32.totalorder %s98, %s99
      %p108 = scmp.eq.s32.totalorder %s23, 0
      %p109 = por %p107, %p108
      %p110 = scmp.ne.s32.totalorder %s98, %s99
      %p111 = scmp.eq.s32.totalorder %s24, 1
      %p112 = por %p110, %p111
      %p114 = scmp.ne.s32.totalorder %s99, %s113
      %p115 = scmp.eq.s32.totalorder %s24, 0
      %p116 = por %p114, %p115
      %s117 = ssub.s32 %s25, %s37
      %s118 = ssub.s32 %s26, %s33
      %s119 = sor.u32 %s117, %s118
      %p120 = scmp.eq.s32.totalorder %s119, 0
      %s122 = sadd.s32 %s121, 1
      %s123 = scalar_select %p120, %s121, %s122
      %p126 = pneg %p120
      %p127 = scmp.eq.s32.totalorder %s18, 1
      %p128 = por %p126, %p127
      %p129 = scmp.ne.s32.totalorder %s121, %s124
      %p130 = scmp.eq.s32.totalorder %s18, 0
      %p131 = por %p129, %p130
      %p132 = scmp.ne.s32.totalorder %s121, %s124
      %p133 = scmp.eq.s32.totalorder %s23, 1
      %p134 = por %p132, %p133
      %p135 = scmp.ne.s32.totalorder %s124, %s125
      %p136 = scmp.eq.s32.totalorder %s23, 0
      %p137 = por %p135, %p136
      %p138 = scmp.ne.s32.totalorder %s124, %s125
      %p139 = scmp.eq.s32.totalorder %s24, 1
      %p140 = por %p138, %p139
      %p142 = scmp.ne.s32.totalorder %s125, %s141
      %p143 = scmp.eq.s32.totalorder %s24, 0
      %p144 = por %p142, %p143
      %p145 = scmp.le.s32.totalorder 1, %s18
      %p146 = scmp.lt.s32.totalorder %s18, 3
      %p147 = pnand %p145, %p146
      %p148 = pneg %p147
      // Predicated region
      $region9: #{tpu_custom_call.1} parent=5 // pred_check
        _
      $region10: #{tpu_custom_call.1} parent=5 // pred_check_branch
        %150 = sbr.rel (%p147) target = $region12
      $region11: #{tpu_custom_call.1} parent=5 // pred_region
        %s151 = ssub.s32 %s18, 1
        // Predicated region
        $region13: #{tpu_custom_call.1} parent=11 // pred_check
          %p152 = pneg %p109
        $region14: #{tpu_custom_call.1} parent=11 // pred_check_branch
          %154 = sbr.rel (%p152) target = $region16
        $region15: #{tpu_custom_call.1} parent=11 // pred_region
          %s156 = ssub.s32 128, 128
          %157 = vsyncadd [#allocation6], %s156
          %s159 = sshll.u32 [#allocation7], 4
          %s160 = int_to_ptr.vmem [resolvable:$true] %s159
          %162 = dma.hbm_to_vmem [thread:$0]  %s2, 128, %s160, [#allocation6]
        $region16: #{tpu_custom_call.1} parent=11 // pred_fallthru
          _
      $region12: #{tpu_custom_call.1} parent=5 // pred_fallthru
        _
      %p163 = scmp.lt.s32.totalorder %s18, 2
      // Predicated region
      $region17: #{tpu_custom_call.1} parent=5 // pred_check
        %p164 = pneg %p163
      $region18: #{tpu_custom_call.1} parent=5 // pred_check_branch
        %166 = sbr.rel (%p164) target = $region20
      $region19: #{tpu_custom_call.1} parent=5 // pred_region
        // Predicated region
        $region21: #{tpu_custom_call.1} parent=19 // pred_check
          %p167 = pneg %p52
        $region22: #{tpu_custom_call.1} parent=19 // pred_check_branch
          %169 = sbr.rel (%p167) target = $region24
        $region23: #{tpu_custom_call.1} parent=19 // pred_region
          %s170 = sand.u32 %s42, 1
          %s171 = scalar_lea.sflag [#allocation3], %s170
          %s172 = sand.u32 %s42, 1
          %s173 = smul.addr %s172, 8
          %s174 = scalar_lea.vmem [#allocation2], %s173
          %s176 = ssub.s32 128, 128
          %177 = vsyncadd %s171, %s176
          %s178 = smul.addr %s25, 2
          %s179 = sadd.s32 %s26, %s178
          %s180 = smul.addr %s179, 128
          %s181 = scalar_lea.hbm %s0, %s180
          %s183 = sshll.u32 %s174, 4
          %s184 = int_to_ptr.vmem [resolvable:$true] %s183
          %186 = dma.hbm_to_vmem [thread:$0]  %s181, 128, %s184, %s171
        $region24: #{tpu_custom_call.1} parent=19 // pred_fallthru
          _
        // Predicated region
        $region25: #{tpu_custom_call.1} parent=19 // pred_check
          %p187 = pneg %p82
        $region26: #{tpu_custom_call.1} parent=19 // pred_check_branch
          %189 = sbr.rel (%p187) target = $region28
        $region27: #{tpu_custom_call.1} parent=19 // pred_region
          %s190 = sand.u32 %s18, 1
          %s191 = scalar_lea.sflag [#allocation6], %s190
          %s192 = sand.u32 %s72, 1
          %s193 = smul.addr %s192, 8
          %s194 = scalar_lea.vmem [#allocation5], %s193
          %s195 = sadd.s32 %s26, 1
          %s197 = ssub.s32 128, 128
          %198 = vsyncadd %s191, %s197
          %s199 = smul.addr %s25, 2
          %s200 = sadd.s32 %s195, %s199
          %s201 = smul.addr %s200, 128
          %s202 = scalar_lea.hbm %s1, %s201
          %s204 = sshll.u32 %s194, 4
          %s205 = int_to_ptr.vmem [resolvable:$true] %s204
          %207 = dma.hbm_to_vmem [thread:$0]  %s202, 128, %s205, %s191
        $region28: #{tpu_custom_call.1} parent=19 // pred_fallthru
          _
      $region20: #{tpu_custom_call.1} parent=5 // pred_fallthru
        _
      %p208 = scmp.le.s32.totalorder 1, %s18
      %p209 = scmp.lt.s32.totalorder %s18, 3
      %p210 = pnand %p208, %p209
      %p211 = pneg %p210
      // Predicated region
      $region29: #{tpu_custom_call.1} parent=5 // pred_check
        _
      $region30: #{tpu_custom_call.1} parent=5 // pred_check_branch
        %213 = sbr.rel (%p210) target = $region32
      $region31: #{tpu_custom_call.1} parent=5 // pred_region
        %s214 = ssub.s32 %s18, 1
        %s215 = sand.u32 %s45, 1
        %s216 = scalar_lea.sflag [#allocation3], %s215
        %s217 = sand.u32 %s45, 1
        %s218 = smul.addr %s217, 8
        %s219 = scalar_lea.vmem [#allocation2], %s218
        // Predicated region
        $region33: #{tpu_custom_call.1} parent=31 // pred_check
          %p220 = pneg %p58
        $region34: #{tpu_custom_call.1} parent=31 // pred_check_branch
          %222 = sbr.rel (%p220) target = $region36
        $region35: #{tpu_custom_call.1} parent=31 // pred_region
          %223 = dma.done %s216, 128
        $region36: #{tpu_custom_call.1} parent=31 // pred_fallthru
          _
        %s224 = sand.u32 %s23, 1
        %s225 = scalar_lea.sflag [#allocation6], %s224
        %s226 = sand.u32 %s75, 1
        %s227 = smul.addr %s226, 8
        %s228 = scalar_lea.vmem [#allocation5], %s227
        // Predicated region
        $region37: #{tpu_custom_call.1} parent=31 // pred_check
          %p229 = pneg %p88
        $region38: #{tpu_custom_call.1} parent=31 // pred_check_branch
          %231 = sbr.rel (%p229) target = $region40
        $region39: #{tpu_custom_call.1} parent=31 // pred_region
          %232 = dma.done %s225, 128
        $region40: #{tpu_custom_call.1} parent=31 // pred_fallthru
          _
        // Predicated region
        $region41: #{tpu_custom_call.1} parent=31 // pred_check
          %p233 = pneg %p109
        $region42: #{tpu_custom_call.1} parent=31 // pred_check_branch
          %235 = sbr.rel (%p233) target = $region44
        $region43: #{tpu_custom_call.1} parent=31 // pred_region
          %236 = dma.done [#allocation6], 128
        $region44: #{tpu_custom_call.1} parent=31 // pred_fallthru
          _
        %s237 = sand.u32 %s45, 1
        %s238 = scalar_lea.sflag [#allocation3], %s237
        %s239 = sand.u32 %s45, 1
        %s240 = smul.addr %s239, 8
        %s241 = scalar_lea.vmem [#allocation2], %s240
        %p242 = pneg %p58
        %p243 = pneg %p55
        %s244 = sand.u32 %s23, 1
        %s245 = scalar_lea.sflag [#allocation6], %s244
        %s246 = sand.u32 %s75, 1
        %s247 = smul.addr %s246, 8
        %s248 = scalar_lea.vmem [#allocation5], %s247
        %p249 = pneg %p88
        %p250 = pneg %p85
        %p251 = pneg %p109
        %p252 = pneg %p106
        %p253 = pneg %p137
        %p254 = pneg %p134
        %s255 = sand.u32 %s124, 1
        %s256 = scalar_lea.sflag [#allocation4], %s255
        %s257 = sand.u32 %s124, 1
        %s258 = smul.addr %s257, 8
        %s259 = scalar_lea.vmem [#allocation8], %s258
        %s260 = sadd.s32 %s28, 1
        %v261 = vld [vmem:[#allocation7] sm:$0xff]
        %v262 = vld [vmem:[%s219] sm:$0xff]
        %v263 = vld [vmem:[%s228] sm:$0xff]
        %266 = vrot.lane.b32.xlu0 %v262, 127
        %v267 = vpop.permute.xlu0 %266
        %268 = vrot.lane.b32.xlu0 %v263, 127
        %v269 = vpop.permute.xlu0 %268
        %vm270 = vcmask 1039360
        %v271 = vsel %vm270, %v267, %v269
        %273 = vrot.lane.b32.xlu0 %v262, 126
        %v274 = vpop.permute.xlu0 %273
        %275 = vrot.lane.b32.xlu0 %v263, 126
        %v276 = vpop.permute.xlu0 %275
        %vm277 = vcmask 1031168
        %v278 = vsel %vm277, %v274, %v276
        %vm280 = vcmask 261120
        %v282 = vsel %vm280, %v261, 0
        %284 = vmatprep.subr.mxu0 0.0
        %285 = vmatpush1.msra.mxu0 0.0
        %286 = vmatprep.subr.mxu0 0.0
        %287 = vmatpush1.msra.mxu0 0.0
        %288 = vmatprep.subr.mxu0 0.0
        %289 = vmatpush1.msra.mxu0 0.0
        %290 = vmatprep.subr.mxu0 0.0
        %291 = vmatpush1.msra.mxu0 0.0
        %292 = vmatprep.subr.mxu0 0.0
        %293 = vmatpush1.msra.mxu0 0.0
        %294 = vmatprep.subr.mxu0 0.0
        %295 = vmatpush1.msra.mxu0 0.0
        %296 = vmatprep.subr.mxu0 0.0
        %297 = vmatpush1.msra.mxu0 0.0
        %298 = vmatprep.subr.mxu0 0.0
        %299 = vmatpush1.msra.mxu0 0.0
        %300 = vmatprep.subr.mxu0 0.0
        %301 = vmatpush1.msra.mxu0 0.0
        %302 = vmatprep.subr.mxu0 0.0
        %303 = vmatpush1.msra.mxu0 0.0
        %304 = vmatprep.subr.mxu0 0.0
        %305 = vmatpush1.msra.mxu0 0.0
        %306 = vmatprep.subr.mxu0 0.0
        %307 = vmatpush1.msra.mxu0 0.0
        %308 = vmatprep.subr.mxu0 0.0
        %309 = vmatpush1.msra.mxu0 1.0
        %310 = vmatprep.subr.mxu0 0.0
        %311 = vmatpush1.msra.mxu0 %v278
        %312 = vmatprep.subr.mxu0 0.0
        %313 = vmatpush1.msra.mxu0 %v271
        %314 = vmatprep.subr.mxu0 0.0
        %315 = vmatpush1.msra.mxu0 %v262
        %316 = vmatprep.subr.mxu0 0.0
        %317 = vmatpush2.msra.mxu0 0.0
        %318 = vmatprep.subr.mxu0 0.0
        %319 = vmatpush2.msra.mxu0 0.0
        %320 = vmatprep.subr.mxu0 0.0
        %321 = vmatpush2.msra.mxu0 0.0
        %322 = vmatprep.subr.mxu0 0.0
        %323 = vmatpush2.msra.mxu0 0.0
        %324 = vmatprep.subr.mxu0 0.0
        %325 = vmatpush2.msra.mxu0 0.0
        %326 = vmatprep.subr.mxu0 0.0
        %327 = vmatpush2.msra.mxu0 0.0
        %328 = vmatprep.subr.mxu0 0.0
        %329 = vmatpush2.msra.mxu0 0.0
        %330 = vmatprep.subr.mxu0 0.0
        %331 = vmatpush2.msra.mxu0 0.0
        %332 = vmatprep.subr.mxu0 0.0
        %333 = vmatpush2.msra.mxu0 0.0
        %334 = vmatprep.subr.mxu0 0.0
        %335 = vmatpush2.msra.mxu0 0.0
        %336 = vmatprep.subr.mxu0 0.0
        %337 = vmatpush2.msra.mxu0 0.0
        %338 = vmatprep.subr.mxu0 0.0
        %339 = vmatpush2.msra.mxu0 0.0
        %340 = vmatprep.subr.mxu0 0.0
        %341 = vmatpush2.msra.mxu0 0.0
        %342 = vmatprep.subr.mxu0 0.0
        %343 = vmatpush2.msra.mxu0 0.0
        %344 = vmatprep.subr.mxu0 0.0
        %345 = vmatpush2.msra.mxu0 0.0
        %346 = vmatprep.subr.mxu0 0.0
        %347 = vmatpush2.msra.mxu0 0.0
        %348 = vmatprep.mubr.f32.mxu0 0.0
        %349 = vmatmul.mubr.f32.gmra.mxu0 %v282
        %v350 = vpop.f32.mrf.mxu0
        %v351 = vadd.f32 0.0, %v350
        %v352 = vpop.f32.mrf.mxu0
        %353 = vdwg.mxu0
        %v354 = vmax.f32 %v351, 0.0
        %355 = vst [vmem:[%s259] sm:$0xff] %v354
        %s356 = sand.u32 %s124, 1
        %s357 = scalar_lea.sflag [#allocation4], %s356
        %s358 = sand.u32 %s124, 1
        %s359 = smul.addr %s358, 8
        %s360 = scalar_lea.vmem [#allocation8], %s359
        // Predicated region
        $region45: #{tpu_custom_call.1} parent=31 // pred_check
          %p361 = pneg %p134
        $region46: #{tpu_custom_call.1} parent=31 // pred_check_branch
          %363 = sbr.rel (%p361) target = $region48
        $region47: #{tpu_custom_call.1} parent=31 // pred_region
          %s365 = ssub.s32 128, 128
          %366 = vsyncadd %s357, %s365
          %s367 = sadd.s32 %s28, %s27
          %s368 = smul.addr %s367, 128
          %s369 = scalar_lea.hbm %s3, %s368
          %s371 = sshll.u32 %s360, 4
          %s372 = int_to_ptr.vmem [resolvable:$true] %s371
          %374 = dma.vmem_to_hbm [thread:$0]  %s372, 128, %s369, %s357
        $region48: #{tpu_custom_call.1} parent=31 // pred_fallthru
          _
      $region32: #{tpu_custom_call.1} parent=5 // pred_fallthru
        _
      %p375 = scmp.le.s32.totalorder 2, %s18
      // Predicated region
      $region49: #{tpu_custom_call.1} parent=5 // pred_check
        %p376 = pneg %p375
      $region50: #{tpu_custom_call.1} parent=5 // pred_check_branch
        %378 = sbr.rel (%p376) target = $region52
      $region51: #{tpu_custom_call.1} parent=5 // pred_region
        %s379 = ssub.s32 %s18, 2
        // Predicated region
        $region53: #{tpu_custom_call.1} parent=51 // pred_check
          %p380 = pneg %p140
        $region54: #{tpu_custom_call.1} parent=51 // pred_check_branch
          %382 = sbr.rel (%p380) target = $region56
        $region55: #{tpu_custom_call.1} parent=51 // pred_region
          %s383 = sand.u32 %s125, 1
          %s384 = scalar_lea.sflag [#allocation4], %s383
          %s385 = sand.u32 %s125, 1
          %s386 = smul.addr %s385, 8
          %s387 = scalar_lea.vmem [#allocation8], %s386
          %388 = dma.done %s384, 128
        $region56: #{tpu_custom_call.1} parent=51 // pred_fallthru
          _
      $region52: #{tpu_custom_call.1} parent=5 // pred_fallthru
        _
    $region6: #{tpu_custom_call.1} parent=1 // loop_footer
      %s22 = sadd.s32 1, %s18
    $region7: #{tpu_custom_call.1} parent=1 // loop_footer_branch
      %17 = sbr.rel target = $region3
    $region8: #{tpu_custom_call.1} parent=1 // loop_exit
      _
    %389 = vsyncpa [#allocation3], 1
    %s390 = scalar_lea.sflag [#allocation3], 1
    %391 = vsyncpa %s390, 1
    %392 = vsyncpa [#allocation6], 1
    %s393 = scalar_lea.sflag [#allocation6], 1
    %394 = vsyncpa %s393, 1
    %395 = vsyncpa [#allocation4], 1
    %s396 = scalar_lea.sflag [#allocation4], 1
    %397 = vsyncpa %s396, 1

</llo_original>
